<compile_context>
chip_gen: v6e
topology: v6e:2x2x1
jax: 0.10.0
libtpu: 0.0.40
codegen_flags: <defaults>
</compile_context>

<pallas_src>
import functools

import numpy as np
import jax
import jax.numpy as jnp
from jax.experimental import pallas as pl
from jax.experimental.pallas import tpu as pltpu


def _ln4dcf_kernel(x_ref, gamma_ref, beta_ref, o_ref, *, inv_n, eps):
    # x_ref:          (1, C, TILE_T, F) float32 block for one (batch, time-tile)
    # gamma/beta_ref: (1, C, 1, F)      float32, replicated across the grid
    x = x_ref[...]

    def _reduce_cf(v):
        # reduce over the channel (axis 1) and freq/lane (axis 3) dims
        return jnp.sum(jnp.sum(v, axis=3, keepdims=True), axis=1, keepdims=True)

    mu = _reduce_cf(x) * inv_n                     # (1, 1, TILE_T, 1)
    d = x - mu
    var = _reduce_cf(d * d) * inv_n                # unbiased=False variance
    inv_std = jax.lax.rsqrt(var + eps)             # EUP rsqrt (separate slot)
    o_ref[...] = d * inv_std * gamma_ref[...] + beta_ref[...]


def _round_up(a, b):
    return (a + b - 1) // b * b


def layer_norm_4d_cf(x, gamma, beta, *, eps=1e-5, max_tile_t=128):
    """Forward pass of LayerNormalization4DCF for x of shape (B, C, T, F)."""
    assert x.ndim == 4, f"Expect x to have 4 dimensions, but got {x.ndim}"
    B, C, T, F = x.shape
    assert gamma.shape == (1, C, 1, F) and beta.shape == (1, C, 1, F)

    x = x.astype(jnp.float32)
    gamma = gamma.astype(jnp.float32)
    beta = beta.astype(jnp.float32)

    # Tile along T: multiple of 8 (sublane), capped so VMEM stays small even for
    # realistic TFGridNet sizes (C~48, F~65 -> ~1.6 MiB per buffer at tile 128).
    tile_t = min(max_tile_t, _round_up(T, 8))
    t_pad = _round_up(T, tile_t)
    if t_pad != T:
        # zero padding: padded t-rows give mu=0, var=0 -> finite output, sliced off.
        x = jnp.pad(x, ((0, 0), (0, 0), (0, t_pad - T), (0, 0)))

    grid = (B, t_pad // tile_t)
    kernel = functools.partial(_ln4dcf_kernel, inv_n=1.0 / (C * F), eps=float(eps))

    out = pl.pallas_call(
        kernel,
        out_shape=jax.ShapeDtypeStruct((B, C, t_pad, F), jnp.float32),
        grid_spec=pltpu.PrefetchScalarGridSpec(
            num_scalar_prefetch=0,
            grid=grid,
            in_specs=[
                pl.BlockSpec((1, C, tile_t, F), lambda b, t: (b, 0, t, 0)),
                pl.BlockSpec((1, C, 1, F), lambda b, t: (0, 0, 0, 0)),
                pl.BlockSpec((1, C, 1, F), lambda b, t: (0, 0, 0, 0)),
            ],
            out_specs=pl.BlockSpec((1, C, tile_t, F), lambda b, t: (b, 0, t, 0)),
        ),
        compiler_params=pltpu.CompilerParams(
            dimension_semantics=("parallel", "parallel")),
    )(x, gamma, beta)

    if t_pad != T:
        out = out[:, :, :T, :]
    return out


def _reference(x, gamma, beta, eps=1e-5):
    mu = x.mean(axis=(1, 3), keepdims=True)
    var = ((x - mu) ** 2).mean(axis=(1, 3), keepdims=True)
    return (x - mu) / jnp.sqrt(var + eps) * gamma + beta


if __name__ == "__main__":
    key = jax.random.PRNGKey(0)
    k1, k2, k3, k4 = jax.random.split(key, 4)

    B, C, T, F = 2, 4, 16, 32
    x = jax.random.normal(k1, (B, C, T, F), dtype=jnp.float32)
    # non-trivial affine params to exercise the gamma/beta path
    gamma = 1.0 + 0.1 * jax.random.normal(k2, (1, C, 1, F), dtype=jnp.float32)
    beta = 0.1 * jax.random.normal(k3, (1, C, 1, F), dtype=jnp.float32)

    out = layer_norm_4d_cf(x, gamma, beta)
    jax.block_until_ready(out)
    np.testing.assert_allclose(
        np.asarray(out), np.asarray(_reference(x, gamma, beta)),
        rtol=1e-4, atol=1e-4)
    assert out.shape == (B, C, T, F) and out.dtype == jnp.float32

    # Second call with T not a multiple of 8 to exercise the T-padding path.
    T2 = 20
    x2 = jax.random.normal(k4, (B, C, T2, F), dtype=jnp.float32)
    out2 = layer_norm_4d_cf(x2, gamma, beta)
    jax.block_until_ready(out2)
    np.testing.assert_allclose(
        np.asarray(out2), np.asarray(_reference(x2, gamma, beta)),
        rtol=1e-4, atol=1e-4)
    assert out2.shape == (B, C, T2, F)

    print("KERNEL_OK")
</pallas_src>

<mosaic_0001>
module attributes {stable_mosaic.version = 11 : i64} {
  func.func @_ln4dcf_kernel(%arg0: i32, %arg1: i32, %arg2: memref<1x4x16x32xf32, #tpu.memory_space<vmem>>, %arg3: memref<1x4x1x32xf32, #tpu.memory_space<vmem>>, %arg4: memref<1x4x1x32xf32, #tpu.memory_space<vmem>>, %arg5: memref<1x4x16x32xf32, #tpu.memory_space<vmem>>) attributes {dimension_semantics = [#tpu.dimension_semantics<parallel>, #tpu.dimension_semantics<parallel>], iteration_bounds = array<i64: 2, 1>, scalar_prefetch = 0 : i64, scratch_operands = 0 : i64, tpu.core_type = #tpu.core_type<tc>, window_params = [{transform_indices = @transform_0, window_bounds = array<i64: 1, 4, 16, 32>}, {pipeline_mode = #tpu.pipeline_mode<synchronous>, transform_indices = @transform_1, window_bounds = array<i64: 1, 4, 1, 32>}, {pipeline_mode = #tpu.pipeline_mode<synchronous>, transform_indices = @transform_2, window_bounds = array<i64: 1, 4, 1, 32>}, {transform_indices = @transform_3, window_bounds = array<i64: 1, 4, 16, 32>}]} {
    %c0 = arith.constant 0 : index
    %c0_0 = arith.constant 0 : index
    %c0_1 = arith.constant 0 : index
    %c0_2 = arith.constant 0 : index
    %0 = vector.load %arg2[%c0, %c0_0, %c0_1, %c0_2] : memref<1x4x16x32xf32, #tpu.memory_space<vmem>>, vector<1x4x16x32xf32>
    %cst = arith.constant dense<0.000000e+00> : vector<1x4x16xf32>
    %1 = vector.multi_reduction <add>, %0, %cst [3] : vector<1x4x16x32xf32> to vector<1x4x16xf32>
    %2 = vector.shape_cast %1 : vector<1x4x16xf32> to vector<1x4x16x1xf32>
    %cst_3 = arith.constant dense<0.000000e+00> : vector<1x16x1xf32>
    %3 = vector.multi_reduction <add>, %2, %cst_3 [1] : vector<1x4x16x1xf32> to vector<1x16x1xf32>
    %4 = vector.shape_cast %3 : vector<1x16x1xf32> to vector<1x1x16x1xf32>
    %cst_4 = arith.constant 7.812500e-03 : f32
    %5 = vector.broadcast %cst_4 : f32 to vector<1x1x16x1xf32>
    %6 = arith.mulf %4, %5 : vector<1x1x16x1xf32>
    %7 = vector.broadcast %6 : vector<1x1x16x1xf32> to vector<1x4x16x32xf32>
    %8 = arith.subf %0, %7 : vector<1x4x16x32xf32>
    %9 = arith.mulf %8, %8 : vector<1x4x16x32xf32>
    %cst_5 = arith.constant dense<0.000000e+00> : vector<1x4x16xf32>
    %10 = vector.multi_reduction <add>, %9, %cst_5 [3] : vector<1x4x16x32xf32> to vector<1x4x16xf32>
    %11 = vector.shape_cast %10 : vector<1x4x16xf32> to vector<1x4x16x1xf32>
    %cst_6 = arith.constant dense<0.000000e+00> : vector<1x16x1xf32>
    %12 = vector.multi_reduction <add>, %11, %cst_6 [1] : vector<1x4x16x1xf32> to vector<1x16x1xf32>
    %13 = vector.shape_cast %12 : vector<1x16x1xf32> to vector<1x1x16x1xf32>
    %cst_7 = arith.constant 7.812500e-03 : f32
    %14 = vector.broadcast %cst_7 : f32 to vector<1x1x16x1xf32>
    %15 = arith.mulf %13, %14 : vector<1x1x16x1xf32>
    %cst_8 = arith.constant 9.99999974E-6 : f32
    %16 = vector.broadcast %cst_8 : f32 to vector<1x1x16x1xf32>
    %17 = arith.addf %15, %16 : vector<1x1x16x1xf32>
    %18 = math.rsqrt %17 : vector<1x1x16x1xf32>
    %19 = vector.broadcast %18 : vector<1x1x16x1xf32> to vector<1x4x16x32xf32>
    %20 = arith.mulf %8, %19 : vector<1x4x16x32xf32>
    %c0_9 = arith.constant 0 : index
    %c0_10 = arith.constant 0 : index
    %c0_11 = arith.constant 0 : index
    %c0_12 = arith.constant 0 : index
    %21 = vector.load %arg3[%c0_9, %c0_10, %c0_11, %c0_12] : memref<1x4x1x32xf32, #tpu.memory_space<vmem>>, vector<1x4x1x32xf32>
    %22 = vector.broadcast %21 : vector<1x4x1x32xf32> to vector<1x4x16x32xf32>
    %23 = arith.mulf %20, %22 : vector<1x4x16x32xf32>
    %c0_13 = arith.constant 0 : index
    %c0_14 = arith.constant 0 : index
    %c0_15 = arith.constant 0 : index
    %c0_16 = arith.constant 0 : index
    %24 = vector.load %arg4[%c0_13, %c0_14, %c0_15, %c0_16] : memref<1x4x1x32xf32, #tpu.memory_space<vmem>>, vector<1x4x1x32xf32>
    %25 = vector.broadcast %24 : vector<1x4x1x32xf32> to vector<1x4x16x32xf32>
    %26 = arith.addf %23, %25 : vector<1x4x16x32xf32>
    %c0_17 = arith.constant 0 : index
    %c0_18 = arith.constant 0 : index
    %c0_19 = arith.constant 0 : index
    %c0_20 = arith.constant 0 : index
    %27 = vector.load %arg5[%c0_17, %c0_18, %c0_19, %c0_20] : memref<1x4x16x32xf32, #tpu.memory_space<vmem>>, vector<1x4x16x32xf32>
    tpu.vector_store %arg5[%c0_17, %c0_18, %c0_19, %c0_20], %26 {strides = array<i32>} : memref<1x4x16x32xf32, #tpu.memory_space<vmem>>, vector<1x4x16x32xf32>,
    return
  }
  func.func @transform_0(%arg0: i32, %arg1: i32) -> (i32, i32, i32, i32) {
    %c0_i32 = arith.constant 0 : i32
    %c0_i32_0 = arith.constant 0 : i32
    %c0_i32_1 = arith.constant 0 : i32
    return %arg0, %c0_i32, %arg1, %c0_i32_0 : i32, i32, i32, i32
  }
  func.func @transform_1(%arg0: i32, %arg1: i32) -> (i32, i32, i32, i32) {
    %c0_i32 = arith.constant 0 : i32
    %c0_i32_0 = arith.constant 0 : i32
    %c0_i32_1 = arith.constant 0 : i32
    %c0_i32_2 = arith.constant 0 : i32
    %c0_i32_3 = arith.constant 0 : i32
    return %c0_i32, %c0_i32_0, %c0_i32_1, %c0_i32_2 : i32, i32, i32, i32
  }
  func.func @transform_2(%arg0: i32, %arg1: i32) -> (i32, i32, i32, i32) {
    %c0_i32 = arith.constant 0 : i32
    %c0_i32_0 = arith.constant 0 : i32
    %c0_i32_1 = arith.constant 0 : i32
    %c0_i32_2 = arith.constant 0 : i32
    %c0_i32_3 = arith.constant 0 : i32
    return %c0_i32, %c0_i32_0, %c0_i32_1, %c0_i32_2 : i32, i32, i32, i32
  }
  func.func @transform_3(%arg0: i32, %arg1: i32) -> (i32, i32, i32, i32) {
    %c0_i32 = arith.constant 0 : i32
    %c0_i32_0 = arith.constant 0 : i32
    %c0_i32_1 = arith.constant 0 : i32
    return %arg0, %c0_i32, %arg1, %c0_i32_0 : i32, i32, i32, i32
  }
}

</mosaic_0001>

<llo_original>
// kernel: tpu_custom_call.1
$region0: #{tpu_custom_call.1}
  #allocation0 [shape = 'u32[]', space=smem, size = 0x4, offset = 0x4, fixed_abs, tag = 'smem constant byte address 0x4 - core index']
  #allocation1 [shape = 'u32[144,128]{1,0:T(1,128)}', space=vmem, size = 0x12000, scoped, tag = 'internal scratch']
  %s0 = inlined_call_operand.hbm [shape: f32[2,4,16,32], index: 0, kind: input, shape index: {}]
  %s1 = inlined_call_operand.hbm [shape: f32[1,4,1,32], index: 1, kind: input, shape index: {}]
  %s2 = inlined_call_operand.hbm [shape: f32[1,4,1,32], index: 2, kind: input, shape index: {}]
  %s3 = inlined_call_operand.hbm [shape: f32[2,4,16,32], index: 3, kind: output, shape index: {}]
  %s4 = sld [smem:[#allocation0]]
  $region57: #{tpu_custom_call.1} parent=0
    _
  %s6 = ssub.s32 1, %s4
  %s7 = scalar_select 0, %s6, %s4
  $region1: #{tpu_custom_call.1} parent=0
    #allocation2 [shape = 'u8[65536]{0}', space=vmem, size = 0x10000, scoped, tag = 'input window, operand 0']
    #allocation3 [shape = 's32[2]{0}', space=sflag, size = 0x8, scoped, tag = 'scoped memory for tpu_custom_call.1']
    #allocation4 [shape = 's32[2]{0}', space=sflag, size = 0x8, scoped, tag = 'scoped memory for tpu_custom_call.1']
    #allocation5 [shape = 'u8[2048]{0}', space=vmem, size = 0x800, scoped, tag = 'input window, operand 1, single buffered']
    #allocation6 [shape = 's32[1]{0}', space=sflag, size = 0x4, scoped, tag = 'scoped memory for tpu_custom_call.1']
    #allocation7 [shape = 'u8[2048]{0}', space=vmem, size = 0x800, scoped, tag = 'input window, operand 2, single buffered']
    #allocation8 [shape = 'u8[65536]{0}', space=vmem, size = 0x10000, scoped, tag = 'output window, operand 0']
    %8 = vsyncpa [#allocation3], 0
    %s9 = scalar_lea.sflag [#allocation3], 1
    %10 = vsyncpa %s9, 0
    %11 = vsyncpa [#allocation6], 0
    %12 = vsyncpa [#allocation4], 0
    %s13 = scalar_lea.sflag [#allocation4], 1
    %14 = vsyncpa %s13, 0
    loop: start=0, step=1, limit=4
    $region2: #{tpu_custom_call.1} parent=1 // loop_pre_header
      _
    $region3: #{tpu_custom_call.1} parent=1 // loop_header
      %s16 = sphi 0, %s20
      %p17 = scmp.ge.s32.totalorder %s16, 4
      %s23 = sphi 0, %s35
      %s24 = sphi 0, %s31
      %s25 = sphi 0, %s23
      %s26 = sphi 0, %s24
      %s27 = sphi 0, %s25
      %s28 = sphi 0, %s26
      %s40 = sphi 0, %s42
      %s43 = sphi 0, %s40
      %s44 = sphi 0, %s43
      %s60 = sphi 0, %s44
      %s64 = sphi 0, %s64
      %s66 = sphi 0, %s64
      %s67 = sphi 0, %s66
      %s81 = sphi 0, %s67
      %s85 = sphi 0, %s85
      %s87 = sphi 0, %s85
      %s88 = sphi 0, %s87
      %s102 = sphi 0, %s88
      %s110 = sphi 0, %s112
      %s113 = sphi 0, %s110
      %s114 = sphi 0, %s113
      %s130 = sphi 0, %s114
    $region4: #{tpu_custom_call.1} parent=1 // loop_header_branch
      %19 = sbr.rel (%p17) target = $region8
    $region5: #{tpu_custom_call.1} parent=1 // loop_body
      %s21 = ssub.s32 %s16, 1
      %s22 = ssub.s32 %s16, 2
      %s29 = sadd.s32 1, %s24
      %p30 = scmp.ge.s32.totalorder %s29, 1
      %s31 = scalar_select %p30, 0, %s29
      %s32 = sadd.s32 1, %s23
      %s33 = scalar_select %p30, %s32, %s23
      %p34 = scmp.ge.s32.totalorder %s33, 2
      %s35 = scalar_select %p34, 0, %s33
      %s36 = ssub.s32 %s23, %s35
      %s37 = ssub.s32 %s24, %s31
      %s38 = sor.u32 %s36, %s37
      %p39 = scmp.eq.s32.totalorder %s38, 0
      %s41 = sadd.s32 %s40, 1
      %s42 = scalar_select %p39, %s40, %s41
      %p45 = pneg %p39
      %p46 = scmp.eq.s32.totalorder %s16, 1
      %p47 = por %p45, %p46
      %p48 = scmp.ne.s32.totalorder %s40, %s43
      %p49 = scmp.eq.s32.totalorder %s16, 0
      %p50 = por %p48, %p49
      %p51 = scmp.ne.s32.totalorder %s40, %s43
      %p52 = scmp.eq.s32.totalorder %s21, 1
      %p53 = por %p51, %p52
      %p54 = scmp.ne.s32.totalorder %s43, %s44
      %p55 = scmp.eq.s32.totalorder %s21, 0
      %p56 = por %p54, %p55
      %p57 = scmp.ne.s32.totalorder %s43, %s44
      %p58 = scmp.eq.s32.totalorder %s22, 1
      %p59 = por %p57, %p58
      %p61 = scmp.ne.s32.totalorder %s44, %s60
      %p62 = scmp.eq.s32.totalorder %s22, 0
      %p63 = por %p61, %p62
      %s65 = sadd.s32 %s64, 1
      %p68 = scmp.eq.s32.totalorder %s16, 1
      %p69 = scmp.ne.s32.totalorder %s64, %s66
      %p70 = scmp.eq.s32.totalorder %s16, 0
      %p71 = por %p69, %p70
      %p72 = scmp.ne.s32.totalorder %s64, %s66
      %p73 = scmp.eq.s32.totalorder %s21, 1
      %p74 = por %p72, %p73
      %p75 = scmp.ne.s32.totalorder %s66, %s67
      %p76 = scmp.eq.s32.totalorder %s21, 0
      %p77 = por %p75, %p76
      %p78 = scmp.ne.s32.totalorder %s66, %s67
      %p79 = scmp.eq.s32.totalorder %s22, 1
      %p80 = por %p78, %p79
      %p82 = scmp.ne.s32.totalorder %s67, %s81
      %p83 = scmp.eq.s32.totalorder %s22, 0
      %p84 = por %p82, %p83
      %s86 = sadd.s32 %s85, 1
      %p89 = scmp.eq.s32.totalorder %s16, 1
      %p90 = scmp.ne.s32.totalorder %s85, %s87
      %p91 = scmp.eq.s32.totalorder %s16, 0
      %p92 = por %p90, %p91
      %p93 = scmp.ne.s32.totalorder %s85, %s87
      %p94 = scmp.eq.s32.totalorder %s21, 1
      %p95 = por %p93, %p94
      %p96 = scmp.ne.s32.totalorder %s87, %s88
      %p97 = scmp.eq.s32.totalorder %s21, 0
      %p98 = por %p96, %p97
      %p99 = scmp.ne.s32.totalorder %s87, %s88
      %p100 = scmp.eq.s32.totalorder %s22, 1
      %p101 = por %p99, %p100
      %p103 = scmp.ne.s32.totalorder %s88, %s102
      %p104 = scmp.eq.s32.totalorder %s22, 0
      %p105 = por %p103, %p104
      %s106 = ssub.s32 %s23, %s35
      %s107 = ssub.s32 %s24, %s31
      %s108 = sor.u32 %s106, %s107
      %p109 = scmp.eq.s32.totalorder %s108, 0
      %s111 = sadd.s32 %s110, 1
      %s112 = scalar_select %p109, %s110, %s111
      %p115 = pneg %p109
      %p116 = scmp.eq.s32.totalorder %s16, 1
      %p117 = por %p115, %p116
      %p118 = scmp.ne.s32.totalorder %s110, %s113
      %p119 = scmp.eq.s32.totalorder %s16, 0
      %p120 = por %p118, %p119
      %p121 = scmp.ne.s32.totalorder %s110, %s113
      %p122 = scmp.eq.s32.totalorder %s21, 1
      %p123 = por %p121, %p122
      %p124 = scmp.ne.s32.totalorder %s113, %s114
      %p125 = scmp.eq.s32.totalorder %s21, 0
      %p126 = por %p124, %p125
      %p127 = scmp.ne.s32.totalorder %s113, %s114
      %p128 = scmp.eq.s32.totalorder %s22, 1
      %p129 = por %p127, %p128
      %p131 = scmp.ne.s32.totalorder %s114, %s130
      %p132 = scmp.eq.s32.totalorder %s22, 0
      %p133 = por %p131, %p132
      %p134 = scmp.le.s32.totalorder 1, %s16
      %p135 = scmp.lt.s32.totalorder %s16, 3
      %p136 = pnand %p134, %p135
      %p137 = pneg %p136
      // Predicated region
      $region9: #{tpu_custom_call.1} parent=5 // pred_check
        _
      $region10: #{tpu_custom_call.1} parent=5 // pred_check_branch
        %139 = sbr.rel (%p136) target = $region12
      $region11: #{tpu_custom_call.1} parent=5 // pred_region
        %s140 = ssub.s32 %s16, 1
        // Predicated region
        $region13: #{tpu_custom_call.1} parent=11 // pred_check
          %p141 = pneg %p77
        $region14: #{tpu_custom_call.1} parent=11 // pred_check_branch
          %143 = sbr.rel (%p141) target = $region16
        $region15: #{tpu_custom_call.1} parent=11 // pred_region
          %s145 = ssub.s32 64, 64
          %146 = vsyncadd [#allocation6], %s145
          %s147 = sshll.u32 [#allocation5], 4
          %s148 = int_to_ptr.vmem [resolvable:$true] %s147
          %153 = dma.hbm_to_vmem [thread:$0]  %s1, 64, %s148, [#allocation6], 16, 16, 1
        $region16: #{tpu_custom_call.1} parent=11 // pred_fallthru
          _
        // Predicated region
        $region17: #{tpu_custom_call.1} parent=11 // pred_check
          %p154 = pneg %p98
        $region18: #{tpu_custom_call.1} parent=11 // pred_check_branch
          %156 = sbr.rel (%p154) target = $region20
        $region19: #{tpu_custom_call.1} parent=11 // pred_region
          %s158 = ssub.s32 64, 64
          %159 = vsyncadd [#allocation6], %s158
          %s160 = sshll.u32 [#allocation7], 4
          %s161 = int_to_ptr.vmem [resolvable:$true] %s160
          %166 = dma.hbm_to_vmem [thread:$0]  %s2, 64, %s161, [#allocation6], 16, 16, 1
        $region20: #{tpu_custom_call.1} parent=11 // pred_fallthru
          _
      $region12: #{tpu_custom_call.1} parent=5 // pred_fallthru
        _
      %p167 = scmp.lt.s32.totalorder %s16, 2
      // Predicated region
      $region21: #{tpu_custom_call.1} parent=5 // pred_check
        %p168 = pneg %p167
      $region22: #{tpu_custom_call.1} parent=5 // pred_check_branch
        %170 = sbr.rel (%p168) target = $region24
      $region23: #{tpu_custom_call.1} parent=5 // pred_region
        // Predicated region
        $region25: #{tpu_custom_call.1} parent=23 // pred_check
          %p171 = pneg %p50
        $region26: #{tpu_custom_call.1} parent=23 // pred_check_branch
          %173 = sbr.rel (%p171) target = $region28
        $region27: #{tpu_custom_call.1} parent=23 // pred_region
          %s174 = sand.u32 %s40, 1
          %s175 = scalar_lea.sflag [#allocation3], %s174
          %s176 = sand.u32 %s40, 1
          %s177 = smul.addr %s176, 64
          %s178 = scalar_lea.vmem [#allocation2], %s177
          %s179 = smul.u32 2, %s24
          %s181 = ssub.s32 1024, 1024
          %182 = vsyncadd %s175, %s181
          %s183 = smul.addr %s23, 8
          %s184 = sadd.s32 %s179, %s183
          %s185 = smul.addr %s184, 128
          %s186 = scalar_lea.hbm %s0, %s185
          %s187 = sshll.u32 %s178, 4
          %s188 = int_to_ptr.vmem [resolvable:$true] %s187
          %193 = dma.hbm_to_vmem [thread:$0]  %s186, 1024, %s188, %s175, 128, 128, 8
        $region28: #{tpu_custom_call.1} parent=23 // pred_fallthru
          _
      $region24: #{tpu_custom_call.1} parent=5 // pred_fallthru
        _
      %p194 = scmp.le.s32.totalorder 1, %s16
      %p195 = scmp.lt.s32.totalorder %s16, 3
      %p196 = pnand %p194, %p195
      %p197 = pneg %p196
      // Predicated region
      $region29: #{tpu_custom_call.1} parent=5 // pred_check
        _
      $region30: #{tpu_custom_call.1} parent=5 // pred_check_branch
        %199 = sbr.rel (%p196) target = $region32
      $region31: #{tpu_custom_call.1} parent=5 // pred_region
        %s200 = ssub.s32 %s16, 1
        %s201 = sand.u32 %s43, 1
        %s202 = scalar_lea.sflag [#allocation3], %s201
        %s203 = sand.u32 %s43, 1
        %s204 = smul.addr %s203, 64
        %s205 = scalar_lea.vmem [#allocation2], %s204
        // Predicated region
        $region33: #{tpu_custom_call.1} parent=31 // pred_check
          %p206 = pneg %p56
        $region34: #{tpu_custom_call.1} parent=31 // pred_check_branch
          %208 = sbr.rel (%p206) target = $region36
        $region35: #{tpu_custom_call.1} parent=31 // pred_region
          %209 = dma.done %s202, 1024
        $region36: #{tpu_custom_call.1} parent=31 // pred_fallthru
          _
        // Predicated region
        $region37: #{tpu_custom_call.1} parent=31 // pred_check
          %p210 = pneg %p77
        $region38: #{tpu_custom_call.1} parent=31 // pred_check_branch
          %212 = sbr.rel (%p210) target = $region40
        $region39: #{tpu_custom_call.1} parent=31 // pred_region
          %213 = dma.done [#allocation6], 64
        $region40: #{tpu_custom_call.1} parent=31 // pred_fallthru
          _
        // Predicated region
        $region41: #{tpu_custom_call.1} parent=31 // pred_check
          %p214 = pneg %p98
        $region42: #{tpu_custom_call.1} parent=31 // pred_check_branch
          %216 = sbr.rel (%p214) target = $region44
        $region43: #{tpu_custom_call.1} parent=31 // pred_region
          %217 = dma.done [#allocation6], 64
        $region44: #{tpu_custom_call.1} parent=31 // pred_fallthru
          _
        %s218 = sand.u32 %s43, 1
        %s219 = scalar_lea.sflag [#allocation3], %s218
        %s220 = sand.u32 %s43, 1
        %s221 = smul.addr %s220, 64
        %s222 = scalar_lea.vmem [#allocation2], %s221
        %p223 = pneg %p56
        %p224 = pneg %p53
        %p225 = pneg %p77
        %p226 = pneg %p74
        %p227 = pneg %p98
        %p228 = pneg %p95
        %p229 = pneg %p126
        %p230 = pneg %p123
        %s231 = sand.u32 %s113, 1
        %s232 = scalar_lea.sflag [#allocation4], %s231
        %s233 = sand.u32 %s113, 1
        %s234 = smul.addr %s233, 64
        %s235 = scalar_lea.vmem [#allocation8], %s234
        %s236 = smul.u32 2, %s26
        %s237 = smul.u32 2, %s26
        %v238 = vld [vmem:[%s205] sm:$0xff]
        %v239 = vld [vmem:[%s205 + $0x8] sm:$0xff]
        %v240 = vld [vmem:[%s205 + $0x10] sm:$0xff]
        %v241 = vld [vmem:[%s205 + $0x18] sm:$0xff]
        %v242 = vld [vmem:[%s205 + $0x20] sm:$0xff]
        %v243 = vld [vmem:[%s205 + $0x28] sm:$0xff]
        %v244 = vld [vmem:[%s205 + $0x30] sm:$0xff]
        %v245 = vld [vmem:[%s205 + $0x38] sm:$0xff]
        %vm246 = vcmask 261120
        %v247 = vsel %vm246, %v238, 0.0
        %248 = vadd.xlane.f32.xlu0 %v247
        %v249 = vpop.xlane.xlu0 %248
        %v250 = vsel %vm246, %v239, 0.0
        %251 = vadd.xlane.f32.xlu0 %v250
        %v252 = vpop.xlane.xlu0 %251
        %v253 = vsel %vm246, %v240, 0.0
        %254 = vadd.xlane.f32.xlu0 %v253
        %v255 = vpop.xlane.xlu0 %254
        %v256 = vsel %vm246, %v241, 0.0
        %257 = vadd.xlane.f32.xlu0 %v256
        %v258 = vpop.xlane.xlu0 %257
        %v259 = vsel %vm246, %v242, 0.0
        %260 = vadd.xlane.f32.xlu0 %v259
        %v261 = vpop.xlane.xlu0 %260
        %v262 = vsel %vm246, %v243, 0.0
        %263 = vadd.xlane.f32.xlu0 %v262
        %v264 = vpop.xlane.xlu0 %263
        %v265 = vsel %vm246, %v244, 0.0
        %266 = vadd.xlane.f32.xlu0 %v265
        %v267 = vpop.xlane.xlu0 %266
        %v268 = vsel %vm246, %v245, 0.0
        %269 = vadd.xlane.f32.xlu0 %v268
        %v270 = vpop.xlane.xlu0 %269
        %v271 = vadd.f32 %v249, %v255
        %v272 = vadd.f32 %v271, %v261
        %v273 = vadd.f32 %v272, %v267
        %v274 = vadd.f32 %v252, %v258
        %v275 = vadd.f32 %v274, %v264
        %v276 = vadd.f32 %v275, %v270
        %v277 = vmul.f32 %v273, 0.0078125
        %v278 = vmul.f32 %v276, 0.0078125
        %v279 = vsub.f32 %v238, %v277
        %v280 = vsub.f32 %v239, %v278
        %v281 = vsub.f32 %v240, %v277
        %v282 = vsub.f32 %v241, %v278
        %v283 = vsub.f32 %v242, %v277
        %v284 = vsub.f32 %v243, %v278
        %v285 = vsub.f32 %v244, %v277
        %v286 = vsub.f32 %v245, %v278
        %v287 = vmul.f32 %v279, %v279
        %v288 = vmul.f32 %v280, %v280
        %v289 = vmul.f32 %v281, %v281
        %v290 = vmul.f32 %v282, %v282
        %v291 = vmul.f32 %v283, %v283
        %v292 = vmul.f32 %v284, %v284
        %v293 = vmul.f32 %v285, %v285
        %v294 = vmul.f32 %v286, %v286
        %v295 = vsel %vm246, %v287, 0.0
        %296 = vadd.xlane.f32.xlu0 %v295
        %v297 = vpop.xlane.xlu0 %296
        %v298 = vsel %vm246, %v288, 0.0
        %299 = vadd.xlane.f32.xlu0 %v298
        %v300 = vpop.xlane.xlu0 %299
        %v301 = vsel %vm246, %v289, 0.0
        %302 = vadd.xlane.f32.xlu0 %v301
        %v303 = vpop.xlane.xlu0 %302
        %v304 = vsel %vm246, %v290, 0.0
        %305 = vadd.xlane.f32.xlu0 %v304
        %v306 = vpop.xlane.xlu0 %305
        %v307 = vsel %vm246, %v291, 0.0
        %308 = vadd.xlane.f32.xlu0 %v307
        %v309 = vpop.xlane.xlu0 %308
        %v310 = vsel %vm246, %v292, 0.0
        %311 = vadd.xlane.f32.xlu0 %v310
        %v312 = vpop.xlane.xlu0 %311
        %v313 = vsel %vm246, %v293, 0.0
        %314 = vadd.xlane.f32.xlu0 %v313
        %v315 = vpop.xlane.xlu0 %314
        %v316 = vsel %vm246, %v294, 0.0
        %317 = vadd.xlane.f32.xlu0 %v316
        %v318 = vpop.xlane.xlu0 %317
        %v319 = vadd.f32 %v297, %v303
        %v320 = vadd.f32 %v319, %v309
        %v321 = vadd.f32 %v320, %v315
        %v322 = vadd.f32 %v300, %v306
        %v323 = vadd.f32 %v322, %v312
        %v324 = vadd.f32 %v323, %v318
        %v325 = vmul.f32 %v321, 0.0078125
        %v326 = vmul.f32 %v324, 0.0078125
        %v327 = vadd.f32 %v325, 1e-05
        %v328 = vadd.f32 %v326, 1e-05
        %v329 = vrsqrt.pop %v327
        %v330 = vrsqrt.pop %v328
        %v331 = vmul.f32 %v279, %v329
        %v332 = vmul.f32 %v280, %v330
        %v333 = vmul.f32 %v281, %v329
        %v334 = vmul.f32 %v282, %v330
        %v335 = vmul.f32 %v283, %v329
        %v336 = vmul.f32 %v284, %v330
        %v337 = vmul.f32 %v285, %v329
        %v338 = vmul.f32 %v286, %v330
        %v339 = vld [vmem:[#allocation5] sm:$0x1]
        %v340 = vld [vmem:[#allocation5 + $0x1] sm:$0x1]
        %v341 = vld [vmem:[#allocation5 + $0x2] sm:$0x1]
        %v342 = vld [vmem:[#allocation5 + $0x3] sm:$0x1]
        %v347 = vlaneseq
        %v348 = vshrl.u32 %v347, 7
        %v349 = vsub.s32 0, %v348
        %v350 = vrot.slane %v339, %v349
        %v351 = vlaneseq
        %v352 = vshrl.u32 %v351, 7
        %v353 = vsub.s32 0, %v352
        %v354 = vrot.slane %v340, %v353
        %v355 = vlaneseq
        %v356 = vshrl.u32 %v355, 7
        %v357 = vsub.s32 0, %v356
        %v358 = vrot.slane %v341, %v357
        %v359 = vlaneseq
        %v360 = vshrl.u32 %v359, 7
        %v361 = vsub.s32 0, %v360
        %v362 = vrot.slane %v342, %v361
        %v367 = vmul.f32 %v331, %v350
        %v368 = vmul.f32 %v332, %v350
        %v369 = vmul.f32 %v333, %v354
        %v370 = vmul.f32 %v334, %v354
        %v371 = vmul.f32 %v335, %v358
        %v372 = vmul.f32 %v336, %v358
        %v373 = vmul.f32 %v337, %v362
        %v374 = vmul.f32 %v338, %v362
        %v375 = vld [vmem:[#allocation7] sm:$0x1]
        %v376 = vld [vmem:[#allocation7 + $0x1] sm:$0x1]
        %v377 = vld [vmem:[#allocation7 + $0x2] sm:$0x1]
        %v378 = vld [vmem:[#allocation7 + $0x3] sm:$0x1]
        %v383 = vlaneseq
        %v384 = vshrl.u32 %v383, 7
        %v385 = vsub.s32 0, %v384
        %v386 = vrot.slane %v375, %v385
        %v387 = vlaneseq
        %v388 = vshrl.u32 %v387, 7
        %v389 = vsub.s32 0, %v388
        %v390 = vrot.slane %v376, %v389
        %v391 = vlaneseq
        %v392 = vshrl.u32 %v391, 7
        %v393 = vsub.s32 0, %v392
        %v394 = vrot.slane %v377, %v393
        %v395 = vlaneseq
        %v396 = vshrl.u32 %v395, 7
        %v397 = vsub.s32 0, %v396
        %v398 = vrot.slane %v378, %v397
        %v403 = vadd.f32 %v367, %v386
        %v404 = vadd.f32 %v368, %v386
        %v405 = vadd.f32 %v369, %v390
        %v406 = vadd.f32 %v370, %v390
        %v407 = vadd.f32 %v371, %v394
        %v408 = vadd.f32 %v372, %v394
        %v409 = vadd.f32 %v373, %v398
        %v410 = vadd.f32 %v374, %v398
        %411 = vst.msk [vmem:[%s235] sm:$0xff] %vm246, %v403
        %412 = vst.msk [vmem:[%s235 + $0x8] sm:$0xff] %vm246, %v404
        %413 = vst.msk [vmem:[%s235 + $0x10] sm:$0xff] %vm246, %v405
        %414 = vst.msk [vmem:[%s235 + $0x18] sm:$0xff] %vm246, %v406
        %415 = vst.msk [vmem:[%s235 + $0x20] sm:$0xff] %vm246, %v407
        %416 = vst.msk [vmem:[%s235 + $0x28] sm:$0xff] %vm246, %v408
        %417 = vst.msk [vmem:[%s235 + $0x30] sm:$0xff] %vm246, %v409
        %418 = vst.msk [vmem:[%s235 + $0x38] sm:$0xff] %vm246, %v410
        %s419 = sand.u32 %s113, 1
        %s420 = scalar_lea.sflag [#allocation4], %s419
        %s421 = sand.u32 %s113, 1
        %s422 = smul.addr %s421, 64
        %s423 = scalar_lea.vmem [#allocation8], %s422
        // Predicated region
        $region45: #{tpu_custom_call.1} parent=31 // pred_check
          %p424 = pneg %p123
        $region46: #{tpu_custom_call.1} parent=31 // pred_check_branch
          %426 = sbr.rel (%p424) target = $region48
        $region47: #{tpu_custom_call.1} parent=31 // pred_region
          %s427 = smul.u32 2, %s26
          %s429 = ssub.s32 1024, 1024
          %430 = vsyncadd %s420, %s429
          %s431 = smul.addr %s25, 8
          %s432 = sadd.s32 %s427, %s431
          %s433 = smul.addr %s432, 128
          %s434 = scalar_lea.hbm %s3, %s433
          %s435 = sshll.u32 %s423, 4
          %s436 = int_to_ptr.vmem [resolvable:$true] %s435
          %441 = dma.vmem_to_hbm [thread:$0]  %s436, 1024, %s434, %s420, 128, 128, 8
        $region48: #{tpu_custom_call.1} parent=31 // pred_fallthru
          _
      $region32: #{tpu_custom_call.1} parent=5 // pred_fallthru
        _
      %p442 = scmp.le.s32.totalorder 2, %s16
      // Predicated region
      $region49: #{tpu_custom_call.1} parent=5 // pred_check
        %p443 = pneg %p442
      $region50: #{tpu_custom_call.1} parent=5 // pred_check_branch
        %445 = sbr.rel (%p443) target = $region52
      $region51: #{tpu_custom_call.1} parent=5 // pred_region
        %s446 = ssub.s32 %s16, 2
        // Predicated region
        $region53: #{tpu_custom_call.1} parent=51 // pred_check
          %p447 = pneg %p129
        $region54: #{tpu_custom_call.1} parent=51 // pred_check_branch
          %449 = sbr.rel (%p447) target = $region56
        $region55: #{tpu_custom_call.1} parent=51 // pred_region
          %s450 = sand.u32 %s114, 1
          %s451 = scalar_lea.sflag [#allocation4], %s450
          %s452 = sand.u32 %s114, 1
          %s453 = smul.addr %s452, 64
          %s454 = scalar_lea.vmem [#allocation8], %s453
          %455 = dma.done %s451, 1024
        $region56: #{tpu_custom_call.1} parent=51 // pred_fallthru
          _
      $region52: #{tpu_custom_call.1} parent=5 // pred_fallthru
        _
    $region6: #{tpu_custom_call.1} parent=1 // loop_footer
      %s20 = sadd.s32 1, %s16
    $region7: #{tpu_custom_call.1} parent=1 // loop_footer_branch
      %15 = sbr.rel target = $region3
    $region8: #{tpu_custom_call.1} parent=1 // loop_exit
      _
    %456 = vsyncpa [#allocation3], 1
    %s457 = scalar_lea.sflag [#allocation3], 1
    %458 = vsyncpa %s457, 1
    %459 = vsyncpa [#allocation6], 1
    %460 = vsyncpa [#allocation4], 1
    %s461 = scalar_lea.sflag [#allocation4], 1
    %462 = vsyncpa %s461, 1

</llo_original>
